<compile_context>
chip_gen: v5e
topology: v5e:2x2
jax: 0.10.0
libtpu: 0.0.40
codegen_flags: <defaults>
</compile_context>

<pallas_src>
import jax
import jax.numpy as jnp
from jax.experimental import pallas as pl
from jax.experimental.pallas import tpu as pltpu


def _softmax_rows_kernel(x_ref, o_ref):
    # x_ref / o_ref: (TR, HWp) tile in VMEM. Softmax along the last (lane) axis.
    x = x_ref[...].astype(jnp.float32)           # upcast in-kernel only
    m = jnp.max(x, axis=-1, keepdims=True)
    e = jnp.exp(x - m)
    s = jnp.sum(e, axis=-1, keepdims=True)
    # Exact reciprocal + multiply keeps ~1e-6 accuracy; pl.reciprocal(s,
    # approx=True) would shave a little EUP work on v7x but loosens tolerance.
    o_ref[...] = (e * pl.reciprocal(s, approx=False)).astype(o_ref.dtype)


def _round_up(n, m):
    return ((n + m - 1) // m) * m


def _choose_row_tile(R, row_bytes, sub, per_tile_budget_bytes):
    """Pick row-tile TR (multiple of `sub`) and padded row count Rp."""
    # Largest tile that fits the per-tile VMEM budget (>= one sublane group).
    max_tr = max((per_tile_budget_bytes // row_bytes) // sub * sub, sub)
    # Never tile past the (sublane-padded) row count.
    max_tr = min(max_tr, _round_up(R, sub))
    # Keep >= 2 grid steps when there are >= 2 sublane groups so the
    # "parallel" row axis can be sharded across v7x's two TensorCores.
    n_sub = _round_up(R, sub) // sub
    if n_sub >= 2:
        max_tr = min(max_tr, ((n_sub + 1) // 2) * sub)
    max_tr = max(max_tr, sub)
    # Prefer the largest TR <= max_tr that divides R exactly (no pad/slice pass).
    best = 0
    t = sub
    while t <= max_tr:
        if R % t == 0:
            best = t
        t += sub
    if best:
        return best, R
    # Rare fallback: pad rows up to a multiple of TR (sliced off afterwards).
    return max_tr, _round_up(R, max_tr)


def softmax_probability_2d(x):
    """Pallas implementation of SoftmaxProbability2D.forward.

    x: (B, C, H, W) float array. Returns same shape/dtype; softmax over H*W
    per (B, C) slice.
    """
    B, C, H, W = x.shape
    R = B * C
    HW = H * W
    dtype = x.dtype
    itemsize = jnp.dtype(dtype).itemsize
    # Sublane packing: 8 rows/vreg at 32-bit, 16 at 16-bit, 32 at 8-bit.
    sub = max(8, 32 // itemsize)
    lane = 128
    HWp = _round_up(HW, lane)

    # ---- Generation-aware VMEM budget --------------------------------------
    try:
        vmem_capacity = int(pltpu.get_tpu_info().vmem_capacity_bytes)
    except Exception:
        vmem_capacity = 64 * 1024 * 1024  # conservative: v7x has 64 MiB / TC
    # Target a few MiB per (TR, HWp) tile; in+out double buffering ~= 4 tiles.
    per_tile_budget = min(8 << 20, vmem_capacity // 10)

    row_bytes = HWp * itemsize
    # TODO(synk): for very large H*W (row_bytes >> per_tile_budget) switch to a
    # second "arbitrary" grid axis over HW with an online (running max/sum)
    # softmax; not needed for LCNet-sized spatial maps.
    tr, Rp = _choose_row_tile(R, row_bytes, sub, per_tile_budget)

    x2 = x.reshape(R, HW)
    pad_r = Rp - R
    pad_l = HWp - HW
    if pad_r or pad_l:
        # Lane padding must be a very negative (finite) value so exp() of the
        # pad is exactly 0 and the softmax over real lanes is unchanged.
        fill = float(jnp.finfo(dtype).min)
        x2 = jnp.pad(x2, ((0, pad_r), (0, pad_l)), constant_values=fill)

    tile_bytes = tr * HWp * itemsize
    vmem_limit = 4 * tile_bytes + (16 << 20)           # dbl-buffered in+out + slack
    vmem_limit = max(32 << 20, min(vmem_limit, (vmem_capacity * 3) // 4))

    out2 = pl.pallas_call(
        _softmax_rows_kernel,
        out_shape=jax.ShapeDtypeStruct((Rp, HWp), dtype),
        grid_spec=pltpu.PrefetchScalarGridSpec(
            num_scalar_prefetch=0,
            grid=(Rp // tr,),
            in_specs=[pl.BlockSpec((tr, HWp), lambda i: (i, 0))],
            out_specs=pl.BlockSpec((tr, HWp), lambda i: (i, 0)),
        ),
        compiler_params=pltpu.CompilerParams(
            dimension_semantics=("parallel",),
            vmem_limit_bytes=int(vmem_limit),
        ),
    )(x2)

    if pad_r or pad_l:
        out2 = out2[:R, :HW]
    return out2.reshape(B, C, H, W)


def _reference(x):
    B, C, H, W = x.shape
    x2 = x.reshape(B, C, H * W).astype(jnp.float32)
    return jax.nn.softmax(x2, axis=-1).astype(x.dtype).reshape(B, C, H, W)


if __name__ == "__main__":
    key = jax.random.PRNGKey(0)
    k0, k1 = jax.random.split(key)

    # Primary test: typical NCHW feature map (lane-dense, divisor-tile path).
    B, C, H, W = 2, 4, 16, 16
    x = jax.random.normal(k0, (B, C, H, W), dtype=jnp.float32)
    out = jax.block_until_ready(softmax_probability_2d(x))
    ref = _reference(x)
    assert out.shape == (B, C, H, W)
    assert jnp.allclose(out, ref, atol=1e-6, rtol=1e-6)
    assert jnp.allclose(out.sum(axis=(2, 3)), jnp.ones((B, C)), atol=1e-5)

    # Second test exercises the row-pad and lane-pad fallback paths.
    B2, C2, H2, W2 = 2, 3, 10, 10
    xb = jax.random.normal(k1, (B2, C2, H2, W2), dtype=jnp.float32)
    outb = jax.block_until_ready(softmax_probability_2d(xb))
    refb = _reference(xb)
    assert outb.shape == (B2, C2, H2, W2)
    assert jnp.allclose(outb, refb, atol=1e-6, rtol=1e-6)
    assert jnp.allclose(outb.sum(axis=(2, 3)), jnp.ones((B2, C2)), atol=1e-5)

    print("KERNEL_OK")
</pallas_src>

<mosaic_0001>
module attributes {stable_mosaic.version = 11 : i64} {
  func.func @_softmax_rows_kernel(%arg0: i32, %arg1: memref<8x256xf32, #tpu.memory_space<vmem>>, %arg2: memref<8x256xf32, #tpu.memory_space<vmem>>) attributes {dimension_semantics = [#tpu.dimension_semantics<parallel>], iteration_bounds = array<i64: 1>, scalar_prefetch = 0 : i64, scratch_operands = 0 : i64, tpu.core_type = #tpu.core_type<tc>, window_params = [{transform_indices = @transform_0, window_bounds = array<i64: 8, 256>}, {transform_indices = @transform_1, window_bounds = array<i64: 8, 256>}]} {
    %c0 = arith.constant 0 : index
    %c0_0 = arith.constant 0 : index
    %0 = vector.load %arg1[%c0, %c0_0] : memref<8x256xf32, #tpu.memory_space<vmem>>, vector<8x256xf32>
    %cst = arith.constant dense<0xFF800000> : vector<8xf32>
    %1 = vector.multi_reduction <maximumf>, %0, %cst [1] : vector<8x256xf32> to vector<8xf32>
    %2 = vector.shape_cast %1 : vector<8xf32> to vector<8x1xf32>
    %3 = vector.broadcast %2 : vector<8x1xf32> to vector<8x256xf32>
    %4 = arith.subf %0, %3 : vector<8x256xf32>
    %5 = math.exp %4 : vector<8x256xf32>
    %cst_1 = arith.constant dense<0.000000e+00> : vector<8xf32>
    %6 = vector.multi_reduction <add>, %5, %cst_1 [1] : vector<8x256xf32> to vector<8xf32>
    %7 = vector.shape_cast %6 : vector<8xf32> to vector<8x1xf32>
    %8 = tpu.reciprocal %7 : vector<8x1xf32> -> vector<8x1xf32>
    %9 = vector.broadcast %8 : vector<8x1xf32> to vector<8x256xf32>
    %10 = arith.mulf %5, %9 : vector<8x256xf32>
    %c0_2 = arith.constant 0 : index
    %c0_3 = arith.constant 0 : index
    %11 = vector.load %arg2[%c0_2, %c0_3] : memref<8x256xf32, #tpu.memory_space<vmem>>, vector<8x256xf32>
    tpu.vector_store %arg2[%c0_2, %c0_3], %10 {strides = array<i32>} : memref<8x256xf32, #tpu.memory_space<vmem>>, vector<8x256xf32>,
    return
  }
  func.func @transform_0(%arg0: i32) -> (i32, i32) {
    %c0_i32 = arith.constant 0 : i32
    %c0_i32_0 = arith.constant 0 : i32
    return %arg0, %c0_i32 : i32, i32
  }
  func.func @transform_1(%arg0: i32) -> (i32, i32) {
    %c0_i32 = arith.constant 0 : i32
    %c0_i32_0 = arith.constant 0 : i32
    return %arg0, %c0_i32 : i32, i32
  }
}

</mosaic_0001>

<llo_original>
// kernel: tpu_custom_call.1
$region0: #{tpu_custom_call.1}
  #allocation0 [shape = 'u32[]', space=smem, size = 0x4, offset = 0x4, fixed_abs, tag = 'smem constant byte address 0x4 - core index']
  #allocation1 [shape = 'u32[72,128]{1,0:T(1,128)}', space=vmem, size = 0x9000, scoped, tag = 'internal scratch']
  %s0 = inlined_call_operand.hbm [shape: f32[8,256], index: 0, kind: input, shape index: {}]
  %s1 = inlined_call_operand.hbm [shape: f32[8,256], index: 1, kind: output, shape index: {}]
  %s2 = sld [smem:[#allocation0]]
  $region18: #{tpu_custom_call.1} parent=0
    _
  %s4 = ssub.s32 1, %s2
  %s5 = scalar_select 0, %s4, %s2
  $region1: #{tpu_custom_call.1} parent=0
    #allocation2 [shape = 'u8[8192]{0}', space=vmem, size = 0x2000, scoped, tag = 'input window, operand 0, single buffered']
    #allocation3 [shape = 's32[1]{0}', space=sflag, size = 0x4, scoped, tag = 'scoped memory for tpu_custom_call.1']
    #allocation4 [shape = 's32[1]{0}', space=sflag, size = 0x4, scoped, tag = 'scoped memory for tpu_custom_call.1']
    #allocation5 [shape = 'u8[8192]{0}', space=vmem, size = 0x2000, scoped, tag = 'output window, operand 0, single buffered']
    %6 = vsyncpa [#allocation3], 0
    %7 = vsyncpa [#allocation4], 0
    // Predicated region
    $region2: #{tpu_custom_call.1} parent=1 // pred_check
      _
    $region3: #{tpu_custom_call.1} parent=1 // pred_check_branch
      %9 = sbr.rel (0) target = $region5
    $region4: #{tpu_custom_call.1} parent=1 // pred_region
      %11 = vsyncadd [#allocation3], 0
      %s13 = sshll.u32 %s0, 4
      %s14 = int_to_ptr.hbm [resolvable:$true] %s13
      %s15 = sshll.u32 [#allocation2], 4
      %s16 = int_to_ptr.vmem [resolvable:$true] %s15
      %18 = dma.hbm_to_vmem [thread:$0]  %s14, 256, %s16, [#allocation3]
    $region5: #{tpu_custom_call.1} parent=1 // pred_fallthru
      _
    // Predicated region
    $region6: #{tpu_custom_call.1} parent=1 // pred_check
      _
    $region7: #{tpu_custom_call.1} parent=1 // pred_check_branch
      %20 = sbr.rel (0) target = $region9
    $region8: #{tpu_custom_call.1} parent=1 // pred_region
      %22 = dma.done [#allocation3], 256
    $region9: #{tpu_custom_call.1} parent=1 // pred_fallthru
      _
    %v23 = vld [vmem:[#allocation2] sm:$0xff]
    %v24 = vld [vmem:[#allocation2 + $0x8] sm:$0xff]
    %v25 = vmax.f32 %v23, %v24
    %26 = vmax.xlane.f32.xlu0 %v25
    %v27 = vpop.xlane.xlu0 %26
    %v28 = vsub.f32 %v23, %v27
    %v29 = vsub.f32 %v24, %v27
    %v30 = vmul.f32 %v28, 1.442695
    %v31 = vpow.pop %v30
    %v32 = vmul.f32 %v29, 1.442695
    %v33 = vpow.pop %v32
    %v34 = vadd.f32 %v31, %v33
    %35 = vadd.xlane.f32.xlu0 %v34
    %v36 = vpop.xlane.xlu0 %35
    %v37 = vrcp.pop %v36
    %v38 = vmul.f32 %v36, %v37
    %v39 = vsub.f32 1.0, %v38
    %v40 = vmul.f32 %v37, %v39
    %v41 = vadd.f32 %v37, %v40
    %vm42 = vweird.f32 %v36
    %vm43 = vweird.f32 %v37
    %vm44 = vmor %vm42, %vm43
    %v45 = vsel %vm44, %v37, %v41
    %v46 = vand.u32 2147483647, %v36
    %vm47 = vcmp.eq.f32.partialorder %v46, 8.507059e+37
    %v48 = vand.u32 %v36, 2147483648
    %v49 = vor.u32 1.1754944e-38, %v48
    %v50 = vsel %vm47, %v49, %v45
    %v51 = vmul.f32 %v31, %v50
    %v52 = vmul.f32 %v33, %v50
    %53 = vst [vmem:[#allocation5] sm:$0xff] %v51
    %54 = vst [vmem:[#allocation5 + $0x8] sm:$0xff] %v52
    // Predicated region
    $region10: #{tpu_custom_call.1} parent=1 // pred_check
      _
    $region11: #{tpu_custom_call.1} parent=1 // pred_check_branch
      %56 = sbr.rel (0) target = $region13
    $region12: #{tpu_custom_call.1} parent=1 // pred_region
      %58 = vsyncadd [#allocation4], 0
      %s60 = sshll.u32 [#allocation5], 4
      %s61 = int_to_ptr.vmem [resolvable:$true] %s60
      %s62 = sshll.u32 %s1, 4
      %s63 = int_to_ptr.hbm [resolvable:$true] %s62
      %65 = dma.vmem_to_hbm [thread:$0]  %s61, 256, %s63, [#allocation4]
    $region13: #{tpu_custom_call.1} parent=1 // pred_fallthru
      _
    // Predicated region
    $region14: #{tpu_custom_call.1} parent=1 // pred_check
      _
    $region15: #{tpu_custom_call.1} parent=1 // pred_check_branch
      %67 = sbr.rel (0) target = $region17
    $region16: #{tpu_custom_call.1} parent=1 // pred_region
      %69 = dma.done [#allocation4], 256
    $region17: #{tpu_custom_call.1} parent=1 // pred_fallthru
      _
    %70 = vsyncpa [#allocation3], 1
    %71 = vsyncpa [#allocation4], 1

</llo_original>
